<compile_context>
chip_gen: v5e
topology: v5e:2x2
jax: 0.10.0
libtpu: 0.0.40
codegen_flags: <defaults>
</compile_context>

<pallas_src>
import jax
import jax.numpy as jnp
from jax.experimental import pallas as pl
from jax.experimental.pallas import tpu as pltpu

D_HIDDEN = 602        # hidden width fixed by the PyTorch module
D_HIDDEN_PAD = 640    # 5 * 128: lane-aligned hidden width
LANE = 128


def _round_up(n, m):
    return (n + m - 1) // m * m


def mlp_head_kernel(x_ref, w1_ref, b1_ref, w2_ref, b2_ref, o_ref):
    x = x_ref[...].astype(jnp.float32)

    # --- LayerNorm(d_in), eps=1e-5, biased variance (matches nn.LayerNorm). ---
    # The affine (gamma, beta) is folded into W1/b1 in the wrapper.
    mean = jnp.mean(x, axis=-1, keepdims=True)
    var = jnp.mean((x - mean) * (x - mean), axis=-1, keepdims=True)
    xn = (x - mean) * jax.lax.rsqrt(var + 1e-5)

    # --- Linear(d_in, 640) on the MXU (602 zero-padded to 640). ---
    h = jnp.dot(xn, w1_ref[...], preferred_element_type=jnp.float32) + b1_ref[...]

    # --- GELU, exact erf form (matches nn.GELU() default). GELU(0)=0, pads stay 0. ---
    h = 0.5 * h * (1.0 + jax.lax.erf(h * jnp.float32(0.7071067811865476)))

    # Dropout(p=0.1): identity at inference time.
    # TODO(synk): training-mode dropout would use pltpu.prng_seed + prng_random_bits.

    # --- Linear(640, d_out padded to 128); zero pad rows/cols contribute nothing. ---
    out = jnp.dot(h, w2_ref[...], preferred_element_type=jnp.float32) + b2_ref[...]
    o_ref[...] = out.astype(o_ref.dtype)


def mlp_head(x, gamma, beta, w1, b1, w2, b2):
    """x: [batch, d_in]; gamma/beta: LayerNorm affine; w1: [d_in, 602], b1: [602];
    w2: [602, d_out], b2: [d_out]. Weights are pre-transposed to [in, out]."""
    batch, d_in = x.shape
    d_out = w2.shape[1]
    d_out_pad = _round_up(d_out, LANE)
    f32 = jnp.float32

    # Fold LayerNorm affine into the first Linear (exact, done once outside the kernel):
    #   (xn * gamma + beta) @ W1 + b1 == xn @ (gamma[:, None] * W1) + (beta @ W1 + b1)
    w1f = gamma.reshape(d_in, 1).astype(f32) * w1.astype(f32)
    b1f = beta.reshape(1, d_in).astype(f32) @ w1.astype(f32) + b1.reshape(1, -1).astype(f32)

    # Zero-pad hidden 602 -> 640 and output d_out -> 128 for lane-dense layouts.
    w1p = jnp.zeros((d_in, D_HIDDEN_PAD), f32).at[:, :D_HIDDEN].set(w1f)
    b1p = jnp.zeros((1, D_HIDDEN_PAD), f32).at[:, :D_HIDDEN].set(b1f)
    w2p = jnp.zeros((D_HIDDEN_PAD, d_out_pad), f32).at[:D_HIDDEN, :d_out].set(w2.astype(f32))
    b2p = jnp.zeros((1, d_out_pad), f32).at[:, :d_out].set(b2.reshape(1, -1).astype(f32))

    # Batch tiling: single full-batch block when small; 256-row blocks across a
    # parallel grid axis when large (megacore on v7x + DMA/compute pipelining).
    if batch > 256 and batch % 256 == 0:
        tile_b = 256
    else:
        tile_b = batch
    grid = (batch // tile_b,)

    out_pad = pl.pallas_call(
        mlp_head_kernel,
        out_shape=jax.ShapeDtypeStruct((batch, d_out_pad), x.dtype),
        grid=grid,
        in_specs=[
            pl.BlockSpec((tile_b, d_in), lambda i: (i, 0)),             # x
            pl.BlockSpec((d_in, D_HIDDEN_PAD), lambda i: (0, 0)),       # W1 (affine-folded, padded)
            pl.BlockSpec((1, D_HIDDEN_PAD), lambda i: (0, 0)),          # b1
            pl.BlockSpec((D_HIDDEN_PAD, d_out_pad), lambda i: (0, 0)),  # W2 (padded)
            pl.BlockSpec((1, d_out_pad), lambda i: (0, 0)),             # b2
        ],
        out_specs=pl.BlockSpec((tile_b, d_out_pad), lambda i: (i, 0)),
        compiler_params=pltpu.CompilerParams(dimension_semantics=("parallel",)),
    )(x, w1p, b1p, w2p, b2p)

    # Slice the lane-padded output back to the true d_out (cheap XLA slice).
    return out_pad[:, :d_out]


def reference(x, gamma, beta, w1, b1, w2, b2):
    xf = x.astype(jnp.float32)
    mean = jnp.mean(xf, axis=-1, keepdims=True)
    var = jnp.mean((xf - mean) ** 2, axis=-1, keepdims=True)
    xn = (xf - mean) / jnp.sqrt(var + 1e-5) * gamma + beta
    h = xn @ w1 + b1
    h = jax.nn.gelu(h, approximate=False)
    return (h @ w2 + b2).astype(x.dtype)


if __name__ == "__main__":
    # Small shapes consistent with the module: batch=8, d_in=32, d_out=10.
    batch, d_in, d_out = 8, 32, 10

    key = jax.random.PRNGKey(0)
    kx, kg, kb, kw1, kb1, kw2, kb2 = jax.random.split(key, 7)

    x = jax.random.normal(kx, (batch, d_in), dtype=jnp.float32)

    # Deterministic parameter init (kaiming-uniform-ish bounds like nn.Linear).
    gamma = jnp.ones((1, d_in), dtype=jnp.float32)
    beta = jnp.zeros((1, d_in), dtype=jnp.float32)

    lim1 = 1.0 / jnp.sqrt(jnp.float32(d_in))
    w1 = jax.random.uniform(kw1, (d_in, D_HIDDEN), jnp.float32, -lim1, lim1)
    b1 = jax.random.uniform(kb1, (1, D_HIDDEN), jnp.float32, -lim1, lim1)

    lim2 = 1.0 / jnp.sqrt(jnp.float32(D_HIDDEN))
    w2 = jax.random.uniform(kw2, (D_HIDDEN, d_out), jnp.float32, -lim2, lim2)
    b2 = jax.random.uniform(kb2, (1, d_out), jnp.float32, -lim2, lim2)

    out = jax.block_until_ready(mlp_head(x, gamma, beta, w1, b1, w2, b2))

    ref = reference(x, gamma, beta, w1, b1, w2, b2)
    assert out.shape == (batch, d_out), out.shape
    assert jnp.allclose(out, ref, atol=1e-4, rtol=1e-4), float(jnp.max(jnp.abs(out - ref)))

    print("KERNEL_OK")
</pallas_src>

<mosaic_0001>
module attributes {stable_mosaic.version = 11 : i64} {
  func.func @mlp_head_kernel(%arg0: i32, %arg1: memref<8x32xf32, #tpu.memory_space<vmem>>, %arg2: memref<32x640xf32, #tpu.memory_space<vmem>>, %arg3: memref<1x640xf32, #tpu.memory_space<vmem>>, %arg4: memref<640x128xf32, #tpu.memory_space<vmem>>, %arg5: memref<1x128xf32, #tpu.memory_space<vmem>>, %arg6: memref<8x128xf32, #tpu.memory_space<vmem>>) attributes {dimension_semantics = [#tpu.dimension_semantics<parallel>], iteration_bounds = array<i64: 1>, scalar_prefetch = 0 : i64, scratch_operands = 0 : i64, tpu.core_type = #tpu.core_type<tc>, window_params = [{transform_indices = @transform_0, window_bounds = array<i64: 8, 32>}, {pipeline_mode = #tpu.pipeline_mode<synchronous>, transform_indices = @transform_1, window_bounds = array<i64: 32, 640>}, {pipeline_mode = #tpu.pipeline_mode<synchronous>, transform_indices = @transform_2, window_bounds = array<i64: 1, 640>}, {pipeline_mode = #tpu.pipeline_mode<synchronous>, transform_indices = @transform_3, window_bounds = array<i64: 640, 128>}, {pipeline_mode = #tpu.pipeline_mode<synchronous>, transform_indices = @transform_4, window_bounds = array<i64: 1, 128>}, {transform_indices = @transform_5, window_bounds = array<i64: 8, 128>}]} {
    %c0 = arith.constant 0 : index
    %c0_0 = arith.constant 0 : index
    %0 = vector.load %arg1[%c0, %c0_0] : memref<8x32xf32, #tpu.memory_space<vmem>>, vector<8x32xf32>
    %cst = arith.constant dense<0.000000e+00> : vector<8xf32>
    %1 = vector.multi_reduction <add>, %0, %cst [1] : vector<8x32xf32> to vector<8xf32>
    %2 = vector.shape_cast %1 : vector<8xf32> to vector<8x1xf32>
    %cst_1 = arith.constant 3.200000e+01 : f32
    %3 = vector.broadcast %cst_1 : f32 to vector<8x1xf32>
    %4 = arith.divf %2, %3 : vector<8x1xf32>
    %5 = vector.broadcast %4 : vector<8x1xf32> to vector<8x32xf32>
    %6 = arith.subf %0, %5 : vector<8x32xf32>
    %7 = vector.broadcast %4 : vector<8x1xf32> to vector<8x32xf32>
    %8 = arith.subf %0, %7 : vector<8x32xf32>
    %9 = arith.mulf %6, %8 : vector<8x32xf32>
    %cst_2 = arith.constant dense<0.000000e+00> : vector<8xf32>
    %10 = vector.multi_reduction <add>, %9, %cst_2 [1] : vector<8x32xf32> to vector<8xf32>
    %11 = vector.shape_cast %10 : vector<8xf32> to vector<8x1xf32>
    %cst_3 = arith.constant 3.200000e+01 : f32
    %12 = vector.broadcast %cst_3 : f32 to vector<8x1xf32>
    %13 = arith.divf %11, %12 : vector<8x1xf32>
    %14 = vector.broadcast %4 : vector<8x1xf32> to vector<8x32xf32>
    %15 = arith.subf %0, %14 : vector<8x32xf32>
    %cst_4 = arith.constant 9.99999974E-6 : f32
    %16 = vector.broadcast %cst_4 : f32 to vector<8x1xf32>
    %17 = arith.addf %13, %16 : vector<8x1xf32>
    %18 = math.rsqrt %17 : vector<8x1xf32>
    %19 = vector.broadcast %18 : vector<8x1xf32> to vector<8x32xf32>
    %20 = arith.mulf %15, %19 : vector<8x32xf32>
    %c0_5 = arith.constant 0 : index
    %c0_6 = arith.constant 0 : index
    %21 = vector.load %arg2[%c0_5, %c0_6] : memref<32x640xf32, #tpu.memory_space<vmem>>, vector<32x640xf32>
    %cst_7 = arith.constant dense<0.000000e+00> : vector<8x640xf32>
    %22 = tpu.matmul %20, %21, %cst_7 {dimension_numbers = #tpu.dot_dimension_numbers<[1], [0], [0], [1], [0, 0, 1, 1], [], []>} : vector<8x32xf32>, vector<32x640xf32>, vector<8x640xf32> -> vector<8x640xf32>
    %c0_8 = arith.constant 0 : index
    %c0_9 = arith.constant 0 : index
    %23 = vector.load %arg3[%c0_8, %c0_9] : memref<1x640xf32, #tpu.memory_space<vmem>>, vector<1x640xf32>
    %24 = vector.broadcast %23 : vector<1x640xf32> to vector<8x640xf32>
    %25 = arith.addf %22, %24 : vector<8x640xf32>
    %cst_10 = arith.constant 5.000000e-01 : f32
    %26 = vector.broadcast %cst_10 : f32 to vector<8x640xf32>
    %27 = arith.mulf %26, %25 : vector<8x640xf32>
    %cst_11 = arith.constant 0.707106769 : f32
    %28 = vector.broadcast %cst_11 : f32 to vector<8x640xf32>
    %29 = arith.mulf %25, %28 : vector<8x640xf32>
    %30 = math.erf %29 : vector<8x640xf32>
    %cst_12 = arith.constant 1.000000e+00 : f32
    %31 = vector.broadcast %cst_12 : f32 to vector<8x640xf32>
    %32 = arith.addf %31, %30 : vector<8x640xf32>
    %33 = arith.mulf %27, %32 : vector<8x640xf32>
    %c0_13 = arith.constant 0 : index
    %c0_14 = arith.constant 0 : index
    %34 = vector.load %arg4[%c0_13, %c0_14] : memref<640x128xf32, #tpu.memory_space<vmem>>, vector<640x128xf32>
    %cst_15 = arith.constant dense<0.000000e+00> : vector<8x128xf32>
    %35 = tpu.matmul %33, %34, %cst_15 {dimension_numbers = #tpu.dot_dimension_numbers<[1], [0], [0], [1], [0, 0, 1, 1], [], []>} : vector<8x640xf32>, vector<640x128xf32>, vector<8x128xf32> -> vector<8x128xf32>
    %c0_16 = arith.constant 0 : index
    %c0_17 = arith.constant 0 : index
    %36 = vector.load %arg5[%c0_16, %c0_17] : memref<1x128xf32, #tpu.memory_space<vmem>>, vector<1x128xf32>
    %37 = vector.broadcast %36 : vector<1x128xf32> to vector<8x128xf32>
    %38 = arith.addf %35, %37 : vector<8x128xf32>
    %c0_18 = arith.constant 0 : index
    %c0_19 = arith.constant 0 : index
    %39 = vector.load %arg6[%c0_18, %c0_19] : memref<8x128xf32, #tpu.memory_space<vmem>>, vector<8x128xf32>
    tpu.vector_store %arg6[%c0_18, %c0_19], %38 {strides = array<i32>} : memref<8x128xf32, #tpu.memory_space<vmem>>, vector<8x128xf32>,
    return
  }
  func.func @transform_0(%arg0: i32) -> (i32, i32) {
    %c0_i32 = arith.constant 0 : i32
    %c0_i32_0 = arith.constant 0 : i32
    return %arg0, %c0_i32 : i32, i32
  }
  func.func @transform_1(%arg0: i32) -> (i32, i32) {
    %c0_i32 = arith.constant 0 : i32
    %c0_i32_0 = arith.constant 0 : i32
    %c0_i32_1 = arith.constant 0 : i32
    return %c0_i32, %c0_i32_0 : i32, i32
  }
  func.func @transform_2(%arg0: i32) -> (i32, i32) {
    %c0_i32 = arith.constant 0 : i32
    %c0_i32_0 = arith.constant 0 : i32
    %c0_i32_1 = arith.constant 0 : i32
    return %c0_i32, %c0_i32_0 : i32, i32
  }
  func.func @transform_3(%arg0: i32) -> (i32, i32) {
    %c0_i32 = arith.constant 0 : i32
    %c0_i32_0 = arith.constant 0 : i32
    %c0_i32_1 = arith.constant 0 : i32
    return %c0_i32, %c0_i32_0 : i32, i32
  }
  func.func @transform_4(%arg0: i32) -> (i32, i32) {
    %c0_i32 = arith.constant 0 : i32
    %c0_i32_0 = arith.constant 0 : i32
    %c0_i32_1 = arith.constant 0 : i32
    return %c0_i32, %c0_i32_0 : i32, i32
  }
  func.func @transform_5(%arg0: i32) -> (i32, i32) {
    %c0_i32 = arith.constant 0 : i32
    %c0_i32_0 = arith.constant 0 : i32
    return %arg0, %c0_i32 : i32, i32
  }
}

</mosaic_0001>

<llo_original>
// kernel: tpu_custom_call.1
$region0: #{tpu_custom_call.1}
  #allocation0 [shape = 'u32[]', space=smem, size = 0x4, offset = 0x4, fixed_abs, tag = 'smem constant byte address 0x4 - core index']
  #allocation1 [shape = 'u32[72,128]{1,0:T(1,128)}', space=vmem, size = 0x9000, scoped, tag = 'internal scratch']
  %s0 = inlined_call_operand.hbm [shape: f32[8,32], index: 0, kind: input, shape index: {}]
  %s1 = inlined_call_operand.hbm [shape: f32[32,640], index: 1, kind: input, shape index: {}]
  %s2 = inlined_call_operand.hbm [shape: f32[1,640], index: 2, kind: input, shape index: {}]
  %s3 = inlined_call_operand.hbm [shape: f32[640,128], index: 3, kind: input, shape index: {}]
  %s4 = inlined_call_operand.vmem [shape: f32[1,128], index: 4, kind: input, shape index: {}]
  %s5 = inlined_call_operand.hbm [shape: f32[8,128], index: 5, kind: output, shape index: {}]
  %s6 = sld [smem:[#allocation0]]
  $region46: #{tpu_custom_call.1} parent=0
    _
  %s8 = ssub.s32 1, %s6
  %s9 = scalar_select 0, %s8, %s6
  $region1: #{tpu_custom_call.1} parent=0
    #allocation2 [shape = 'u8[4096]{0}', space=vmem, size = 0x1000, scoped, tag = 'input window, operand 0, single buffered']
    #allocation3 [shape = 's32[1]{0}', space=sflag, size = 0x4, scoped, tag = 'scoped memory for tpu_custom_call.1']
    #allocation4 [shape = 's32[1]{0}', space=sflag, size = 0x4, scoped, tag = 'scoped memory for tpu_custom_call.1']
    #allocation5 [shape = 'u8[81920]{0}', space=vmem, size = 0x14000, scoped, tag = 'input window, operand 1, single buffered']
    #allocation6 [shape = 's32[1]{0}', space=sflag, size = 0x4, scoped, tag = 'scoped memory for tpu_custom_call.1']
    #allocation7 [shape = 'u8[2560]{0}', space=vmem, size = 0xc00, scoped, tag = 'input window, operand 2, single buffered']
    #allocation8 [shape = 'u8[327680]{0}', space=vmem, size = 0x50000, scoped, tag = 'input window, operand 3, single buffered']
    #allocation9 [shape = 's32[1]{0}', space=sflag, size = 0x4, scoped, tag = 'scoped memory for tpu_custom_call.1']
    #allocation10 [shape = 'u8[4096]{0}', space=vmem, size = 0x1000, scoped, tag = 'output window, operand 0, single buffered']
    %10 = vsyncpa [#allocation3], 0
    %11 = vsyncpa [#allocation6], 0
    %12 = vsyncpa [#allocation9], 0
    %13 = vsyncpa [#allocation4], 0
    // Predicated region
    $region2: #{tpu_custom_call.1} parent=1 // pred_check
      _
    $region3: #{tpu_custom_call.1} parent=1 // pred_check_branch
      %15 = sbr.rel (0) target = $region5
    $region4: #{tpu_custom_call.1} parent=1 // pred_region
      %17 = vsyncadd [#allocation3], 0
      %s19 = sshll.u32 %s0, 4
      %s20 = int_to_ptr.hbm [resolvable:$true] %s19
      %s21 = sshll.u32 [#allocation2], 4
      %s22 = int_to_ptr.vmem [resolvable:$true] %s21
      %24 = dma.hbm_to_vmem [thread:$0]  %s20, 128, %s22, [#allocation3]
    $region5: #{tpu_custom_call.1} parent=1 // pred_fallthru
      _
    // Predicated region
    $region6: #{tpu_custom_call.1} parent=1 // pred_check
      _
    $region7: #{tpu_custom_call.1} parent=1 // pred_check_branch
      %26 = sbr.rel (0) target = $region9
    $region8: #{tpu_custom_call.1} parent=1 // pred_region
      %28 = vsyncadd [#allocation6], 0
      %s29 = sshll.u32 %s1, 4
      %s30 = int_to_ptr.hbm [resolvable:$true] %s29
      %s31 = sshll.u32 [#allocation5], 4
      %s32 = int_to_ptr.vmem [resolvable:$true] %s31
      %37 = dma.hbm_to_vmem [thread:$0]  %s30, 2560, %s32, [#allocation6], 640, 640, 40
    $region9: #{tpu_custom_call.1} parent=1 // pred_fallthru
      _
    // Predicated region
    $region10: #{tpu_custom_call.1} parent=1 // pred_check
      _
    $region11: #{tpu_custom_call.1} parent=1 // pred_check_branch
      %39 = sbr.rel (0) target = $region13
    $region12: #{tpu_custom_call.1} parent=1 // pred_region
      %41 = vsyncadd [#allocation6], 0
      %s43 = sshll.u32 %s2, 4
      %s44 = int_to_ptr.hbm [resolvable:$true] %s43
      %s45 = sshll.u32 [#allocation7], 4
      %s46 = int_to_ptr.vmem [resolvable:$true] %s45
      %48 = dma.hbm_to_vmem [thread:$0]  %s44, 80, %s46, [#allocation6]
    $region13: #{tpu_custom_call.1} parent=1 // pred_fallthru
      _
    // Predicated region
    $region14: #{tpu_custom_call.1} parent=1 // pred_check
      _
    $region15: #{tpu_custom_call.1} parent=1 // pred_check_branch
      %50 = sbr.rel (0) target = $region17
    $region16: #{tpu_custom_call.1} parent=1 // pred_region
      %52 = vsyncadd [#allocation9], 0
      %s53 = sshll.u32 %s3, 4
      %s54 = int_to_ptr.hbm [resolvable:$true] %s53
      %s55 = sshll.u32 [#allocation8], 4
      %s56 = int_to_ptr.vmem [resolvable:$true] %s55
      %61 = dma.hbm_to_vmem [thread:$0]  %s54, 10240, %s56, [#allocation9], 128, 128, 8
    $region17: #{tpu_custom_call.1} parent=1 // pred_fallthru
      _
    // Predicated region
    $region18: #{tpu_custom_call.1} parent=1 // pred_check
      _
    $region19: #{tpu_custom_call.1} parent=1 // pred_check_branch
      %63 = sbr.rel (0) target = $region21
    $region20: #{tpu_custom_call.1} parent=1 // pred_region
      _
    $region21: #{tpu_custom_call.1} parent=1 // pred_fallthru
      _
    // Predicated region
    $region22: #{tpu_custom_call.1} parent=1 // pred_check
      _
    $region23: #{tpu_custom_call.1} parent=1 // pred_check_branch
      %65 = sbr.rel (0) target = $region25
    $region24: #{tpu_custom_call.1} parent=1 // pred_region
      %67 = dma.done [#allocation3], 128
    $region25: #{tpu_custom_call.1} parent=1 // pred_fallthru
      _
    // Predicated region
    $region26: #{tpu_custom_call.1} parent=1 // pred_check
      _
    $region27: #{tpu_custom_call.1} parent=1 // pred_check_branch
      %69 = sbr.rel (0) target = $region29
    $region28: #{tpu_custom_call.1} parent=1 // pred_region
      %71 = dma.done [#allocation6], 2560
    $region29: #{tpu_custom_call.1} parent=1 // pred_fallthru
      _
    // Predicated region
    $region30: #{tpu_custom_call.1} parent=1 // pred_check
      _
    $region31: #{tpu_custom_call.1} parent=1 // pred_check_branch
      %73 = sbr.rel (0) target = $region33
    $region32: #{tpu_custom_call.1} parent=1 // pred_region
      %75 = dma.done [#allocation6], 80
    $region33: #{tpu_custom_call.1} parent=1 // pred_fallthru
      _
    // Predicated region
    $region34: #{tpu_custom_call.1} parent=1 // pred_check
      _
    $region35: #{tpu_custom_call.1} parent=1 // pred_check_branch
      %77 = sbr.rel (0) target = $region37
    $region36: #{tpu_custom_call.1} parent=1 // pred_region
      %79 = dma.done [#allocation9], 10240
    $region37: #{tpu_custom_call.1} parent=1 // pred_fallthru
      _
    %v80 = vld [vmem:[#allocation2] sm:$0xff]
    %vm81 = vcmask 261120
    %v82 = vsel %vm81, %v80, 0.0
    %83 = vadd.xlane.f32.xlu0 %v82
    %v84 = vpop.xlane.xlu0 %83
    %v85 = vrcp.pop 32.0
    %v86 = vmul.f32 32.0, %v85
    %v87 = vsub.f32 1.0, %v86
    %v88 = vmul.f32 %v85, %v87
    %v89 = vadd.f32 %v85, %v88
    %vm90 = vweird.f32 %v85
    %v91 = vsel %vm90, %v85, %v89
    %v92 = vmul.f32 %v84, %v91
    %v93 = vsub.f32 %v80, %v92
    %v94 = vmul.f32 %v93, %v93
    %v95 = vsel %vm81, %v94, 0.0
    %96 = vadd.xlane.f32.xlu0 %v95
    %v97 = vpop.xlane.xlu0 %96
    %v98 = vmul.f32 %v97, %v91
    %v99 = vadd.f32 %v98, 1e-05
    %v100 = vrsqrt.pop %v99
    %v101 = vmul.f32 %v100, %v99
    %v102 = vmul.f32 %v101, %v100
    %v103 = vmul.f32 0.5, %v102
    %v104 = vsub.f32 1.5, %v103
    %v105 = vmul.f32 %v100, %v104
    %vm106 = vweird.f32 %v99
    %vm107 = vweird.f32 %v100
    %vm108 = vmor %vm106, %vm107
    %v109 = vsel %vm108, %v100, %v105
    %v110 = vmul.f32 %v93, %v109
    %v111 = vld [vmem:[#allocation5] sm:$0xff]
    %v112 = vld [vmem:[#allocation5 + $0x8] sm:$0xff]
    %v113 = vld [vmem:[#allocation5 + $0x10] sm:$0xff]
    %v114 = vld [vmem:[#allocation5 + $0x18] sm:$0xff]
    %v115 = vld [vmem:[#allocation5 + $0x20] sm:$0xff]
    %v116 = vld [vmem:[#allocation5 + $0x28] sm:$0xff]
    %v117 = vld [vmem:[#allocation5 + $0x30] sm:$0xff]
    %v118 = vld [vmem:[#allocation5 + $0x38] sm:$0xff]
    %v119 = vld [vmem:[#allocation5 + $0x40] sm:$0xff]
    %v120 = vld [vmem:[#allocation5 + $0x48] sm:$0xff]
    %v121 = vld [vmem:[#allocation5 + $0x50] sm:$0xff]
    %v122 = vld [vmem:[#allocation5 + $0x58] sm:$0xff]
    %v123 = vld [vmem:[#allocation5 + $0x60] sm:$0xff]
    %v124 = vld [vmem:[#allocation5 + $0x68] sm:$0xff]
    %v125 = vld [vmem:[#allocation5 + $0x70] sm:$0xff]
    %v126 = vld [vmem:[#allocation5 + $0x78] sm:$0xff]
    %v127 = vld [vmem:[#allocation5 + $0x80] sm:$0xff]
    %v128 = vld [vmem:[#allocation5 + $0x88] sm:$0xff]
    %v129 = vld [vmem:[#allocation5 + $0x90] sm:$0xff]
    %v130 = vld [vmem:[#allocation5 + $0x98] sm:$0xff]
    %v131 = vld [vmem:[#allocation7] sm:$0x1f]
    %v133 = vperm.slane %v131, 0
    %v134 = vperm.slane %v131, 1
    %v135 = vperm.slane %v131, 2
    %v136 = vperm.slane %v131, 3
    %v137 = vperm.slane %v131, 4
    %v144 = vsel %vm81, %v110, 0
    %146 = vmatpush.msra.mxu0 0.0
    %147 = vmatpush.msra.mxu0 0.0
    %148 = vmatpush.msra.mxu0 0.0
    %149 = vmatpush.msra.mxu0 0.0
    %150 = vmatpush.msra.mxu0 0.0
    %151 = vmatpush.msra.mxu0 0.0
    %152 = vmatpush.msra.mxu0 0.0
    %153 = vmatpush.msra.mxu0 0.0
    %154 = vmatpush.msra.mxu0 0.0
    %155 = vmatpush.msra.mxu0 0.0
    %156 = vmatpush.msra.mxu0 0.0
    %157 = vmatpush.msra.mxu0 0.0
    %158 = vmatpush.msra.mxu0 %v126
    %159 = vmatpush.msra.mxu0 %v121
    %160 = vmatpush.msra.mxu0 %v116
    %161 = vmatpush.msra.mxu0 %v111
    %162 = vmatmul.f32.gmra.mxu0 %v144
    %v163 = vpop.f32.mrf.mxu0
    %v164 = vadd.f32 %v133, %v163
    %165 = vdwg.mxu0
    %166 = vmatpush.msra.mxu0 0.0
    %167 = vmatpush.msra.mxu0 0.0
    %168 = vmatpush.msra.mxu0 0.0
    %169 = vmatpush.msra.mxu0 0.0
    %170 = vmatpush.msra.mxu0 0.0
    %171 = vmatpush.msra.mxu0 0.0
    %172 = vmatpush.msra.mxu0 0.0
    %173 = vmatpush.msra.mxu0 0.0
    %174 = vmatpush.msra.mxu0 0.0
    %175 = vmatpush.msra.mxu0 0.0
    %176 = vmatpush.msra.mxu0 0.0
    %177 = vmatpush.msra.mxu0 0.0
    %178 = vmatpush.msra.mxu0 %v127
    %179 = vmatpush.msra.mxu0 %v122
    %180 = vmatpush.msra.mxu0 %v117
    %181 = vmatpush.msra.mxu0 %v112
    %182 = vmatmul.f32.gmra.mxu0 %v144
    %v183 = vpop.f32.mrf.mxu0
    %v184 = vadd.f32 %v134, %v183
    %185 = vdwg.mxu0
    %186 = vmatpush.msra.mxu0 0.0
    %187 = vmatpush.msra.mxu0 0.0
    %188 = vmatpush.msra.mxu0 0.0
    %189 = vmatpush.msra.mxu0 0.0
    %190 = vmatpush.msra.mxu0 0.0
    %191 = vmatpush.msra.mxu0 0.0
    %192 = vmatpush.msra.mxu0 0.0
    %193 = vmatpush.msra.mxu0 0.0
    %194 = vmatpush.msra.mxu0 0.0
    %195 = vmatpush.msra.mxu0 0.0
    %196 = vmatpush.msra.mxu0 0.0
    %197 = vmatpush.msra.mxu0 0.0
    %198 = vmatpush.msra.mxu0 %v128
    %199 = vmatpush.msra.mxu0 %v123
    %200 = vmatpush.msra.mxu0 %v118
    %201 = vmatpush.msra.mxu0 %v113
    %202 = vmatmul.f32.gmra.mxu0 %v144
    %v203 = vpop.f32.mrf.mxu0
    %v204 = vadd.f32 %v135, %v203
    %205 = vdwg.mxu0
    %206 = vmatpush.msra.mxu0 0.0
    %207 = vmatpush.msra.mxu0 0.0
    %208 = vmatpush.msra.mxu0 0.0
    %209 = vmatpush.msra.mxu0 0.0
    %210 = vmatpush.msra.mxu0 0.0
    %211 = vmatpush.msra.mxu0 0.0
    %212 = vmatpush.msra.mxu0 0.0
    %213 = vmatpush.msra.mxu0 0.0
    %214 = vmatpush.msra.mxu0 0.0
    %215 = vmatpush.msra.mxu0 0.0
    %216 = vmatpush.msra.mxu0 0.0
    %217 = vmatpush.msra.mxu0 0.0
    %218 = vmatpush.msra.mxu0 %v129
    %219 = vmatpush.msra.mxu0 %v124
    %220 = vmatpush.msra.mxu0 %v119
    %221 = vmatpush.msra.mxu0 %v114
    %222 = vmatmul.f32.gmra.mxu0 %v144
    %v223 = vpop.f32.mrf.mxu0
    %v224 = vadd.f32 %v136, %v223
    %225 = vdwg.mxu0
    %226 = vmatpush.msra.mxu0 0.0
    %227 = vmatpush.msra.mxu0 0.0
    %228 = vmatpush.msra.mxu0 0.0
    %229 = vmatpush.msra.mxu0 0.0
    %230 = vmatpush.msra.mxu0 0.0
    %231 = vmatpush.msra.mxu0 0.0
    %232 = vmatpush.msra.mxu0 0.0
    %233 = vmatpush.msra.mxu0 0.0
    %234 = vmatpush.msra.mxu0 0.0
    %235 = vmatpush.msra.mxu0 0.0
    %236 = vmatpush.msra.mxu0 0.0
    %237 = vmatpush.msra.mxu0 0.0
    %238 = vmatpush.msra.mxu0 %v130
    %239 = vmatpush.msra.mxu0 %v125
    %240 = vmatpush.msra.mxu0 %v120
    %241 = vmatpush.msra.mxu0 %v115
    %242 = vmatmul.f32.gmra.mxu0 %v144
    %v243 = vpop.f32.mrf.mxu0
    %v244 = vadd.f32 %v137, %v243
    %245 = vdwg.mxu0
    %v246 = vmul.f32 %v164, 0.5
    %v247 = vmul.f32 %v184, 0.5
    %v248 = vmul.f32 %v204, 0.5
    %v249 = vmul.f32 %v224, 0.5
    %v250 = vmul.f32 %v244, 0.5
    %v251 = vmul.f32 %v164, 0.70710677
    %v252 = vmul.f32 %v184, 0.70710677
    %v253 = vmul.f32 %v204, 0.70710677
    %v254 = vmul.f32 %v224, 0.70710677
    %v255 = vmul.f32 %v244, 0.70710677
    %v256 = vmul.f32 %v251, %v251
    %v257 = vmin.f32 16.0, %v256
    %v258 = vmul.f32 %v257, 2.1237322e-06
    %v259 = vadd.f32 %v258, 0.00028619796
    %v260 = vmul.f32 %v257, %v259
    %v261 = vadd.f32 %v260, 0.0036580483
    %v262 = vmul.f32 %v257, %v261
    %v263 = vadd.f32 %v262, 0.05243302
    %v264 = vmul.f32 %v257, %v263
    %v265 = vadd.f32 %v264, 0.18741608
    %v266 = vmul.f32 %v257, %v265
    %v267 = vadd.f32 %v266, 1.1283791
    %v268 = vmul.f32 %v251, %v267
    %v269 = vmul.f32 %v257, 3.8918573e-05
    %v270 = vadd.f32 %v269, 0.001143296
    %v271 = vmul.f32 %v257, %v270
    %v272 = vadd.f32 %v271, 0.014752088
    %v273 = vmul.f32 %v257, %v272
    %v274 = vadd.f32 %v273, 0.112945676
    %v275 = vmul.f32 %v257, %v274
    %v276 = vadd.f32 %v275, 0.4994258
    %v277 = vmul.f32 %v257, %v276
    %v278 = vadd.f32 %v277, 1.0
    %v279 = vrcp.pop %v278
    %v280 = vmul.f32 %v278, %v279
    %v281 = vsub.f32 1.0, %v280
    %v282 = vmul.f32 %v279, %v281
    %v283 = vadd.f32 %v279, %v282
    %vm284 = vweird.f32 %v278
    %vm285 = vweird.f32 %v279
    %vm286 = vmor %vm284, %vm285
    %v287 = vsel %vm286, %v279, %v283
    %v288 = vand.u32 2147483647, %v278
    %vm289 = vcmp.eq.f32.partialorder %v288, 8.507059e+37
    %v290 = vand.u32 %v278, 2147483648
    %v291 = vor.u32 1.1754944e-38, %v290
    %v292 = vsel %vm289, %v291, %v287
    %v293 = vmul.f32 %v268, %v292
    %v294 = vmin.f32 %v293, 1.0
    %v295 = vmax.f32 %v294, -1.0
    %v296 = vmul.f32 %v252, %v252
    %v297 = vmin.f32 16.0, %v296
    %v298 = vmul.f32 %v297, 2.1237322e-06
    %v299 = vadd.f32 %v298, 0.00028619796
    %v300 = vmul.f32 %v297, %v299
    %v301 = vadd.f32 %v300, 0.0036580483
    %v302 = vmul.f32 %v297, %v301
    %v303 = vadd.f32 %v302, 0.05243302
    %v304 = vmul.f32 %v297, %v303
    %v305 = vadd.f32 %v304, 0.18741608
    %v306 = vmul.f32 %v297, %v305
    %v307 = vadd.f32 %v306, 1.1283791
    %v308 = vmul.f32 %v252, %v307
    %v309 = vmul.f32 %v297, 3.8918573e-05
    %v310 = vadd.f32 %v309, 0.001143296
    %v311 = vmul.f32 %v297, %v310
    %v312 = vadd.f32 %v311, 0.014752088
    %v313 = vmul.f32 %v297, %v312
    %v314 = vadd.f32 %v313, 0.112945676
    %v315 = vmul.f32 %v297, %v314
    %v316 = vadd.f32 %v315, 0.4994258
    %v317 = vmul.f32 %v297, %v316
    %v318 = vadd.f32 %v317, 1.0
    %v319 = vrcp.pop %v318
    %v320 = vmul.f32 %v318, %v319
    %v321 = vsub.f32 1.0, %v320
    %v322 = vmul.f32 %v319, %v321
    %v323 = vadd.f32 %v319, %v322
    %vm324 = vweird.f32 %v318
    %vm325 = vweird.f32 %v319
    %vm326 = vmor %vm324, %vm325
    %v327 = vsel %vm326, %v319, %v323
    %v328 = vand.u32 2147483647, %v318
    %vm329 = vcmp.eq.f32.partialorder %v328, 8.507059e+37
    %v330 = vand.u32 %v318, 2147483648
    %v331 = vor.u32 1.1754944e-38, %v330
    %v332 = vsel %vm329, %v331, %v327
    %v333 = vmul.f32 %v308, %v332
    %v334 = vmin.f32 %v333, 1.0
    %v335 = vmax.f32 %v334, -1.0
    %v336 = vmul.f32 %v253, %v253
    %v337 = vmin.f32 16.0, %v336
    %v338 = vmul.f32 %v337, 2.1237322e-06
    %v339 = vadd.f32 %v338, 0.00028619796
    %v340 = vmul.f32 %v337, %v339
    %v341 = vadd.f32 %v340, 0.0036580483
    %v342 = vmul.f32 %v337, %v341
    %v343 = vadd.f32 %v342, 0.05243302
    %v344 = vmul.f32 %v337, %v343
    %v345 = vadd.f32 %v344, 0.18741608
    %v346 = vmul.f32 %v337, %v345
    %v347 = vadd.f32 %v346, 1.1283791
    %v348 = vmul.f32 %v253, %v347
    %v349 = vmul.f32 %v337, 3.8918573e-05
    %v350 = vadd.f32 %v349, 0.001143296
    %v351 = vmul.f32 %v337, %v350
    %v352 = vadd.f32 %v351, 0.014752088
    %v353 = vmul.f32 %v337, %v352
    %v354 = vadd.f32 %v353, 0.112945676
    %v355 = vmul.f32 %v337, %v354
    %v356 = vadd.f32 %v355, 0.4994258
    %v357 = vmul.f32 %v337, %v356
    %v358 = vadd.f32 %v357, 1.0
    %v359 = vrcp.pop %v358
    %v360 = vmul.f32 %v358, %v359
    %v361 = vsub.f32 1.0, %v360
    %v362 = vmul.f32 %v359, %v361
    %v363 = vadd.f32 %v359, %v362
    %vm364 = vweird.f32 %v358
    %vm365 = vweird.f32 %v359
    %vm366 = vmor %vm364, %vm365
    %v367 = vsel %vm366, %v359, %v363
    %v368 = vand.u32 2147483647, %v358
    %vm369 = vcmp.eq.f32.partialorder %v368, 8.507059e+37
    %v370 = vand.u32 %v358, 2147483648
    %v371 = vor.u32 1.1754944e-38, %v370
    %v372 = vsel %vm369, %v371, %v367
    %v373 = vmul.f32 %v348, %v372
    %v374 = vmin.f32 %v373, 1.0
    %v375 = vmax.f32 %v374, -1.0
    %v376 = vmul.f32 %v254, %v254
    %v377 = vmin.f32 16.0, %v376
    %v378 = vmul.f32 %v377, 2.1237322e-06
    %v379 = vadd.f32 %v378, 0.00028619796
    %v380 = vmul.f32 %v377, %v379
    %v381 = vadd.f32 %v380, 0.0036580483
    %v382 = vmul.f32 %v377, %v381
    %v383 = vadd.f32 %v382, 0.05243302
    %v384 = vmul.f32 %v377, %v383
    %v385 = vadd.f32 %v384, 0.18741608
    %v386 = vmul.f32 %v377, %v385
    %v387 = vadd.f32 %v386, 1.1283791
    %v388 = vmul.f32 %v254, %v387
    %v389 = vmul.f32 %v377, 3.8918573e-05
    %v390 = vadd.f32 %v389, 0.001143296
    %v391 = vmul.f32 %v377, %v390
    %v392 = vadd.f32 %v391, 0.014752088
    %v393 = vmul.f32 %v377, %v392
    %v394 = vadd.f32 %v393, 0.112945676
    %v395 = vmul.f32 %v377, %v394
    %v396 = vadd.f32 %v395, 0.4994258
    %v397 = vmul.f32 %v377, %v396
    %v398 = vadd.f32 %v397, 1.0
    %v399 = vrcp.pop %v398
    %v400 = vmul.f32 %v398, %v399
    %v401 = vsub.f32 1.0, %v400
    %v402 = vmul.f32 %v399, %v401
    %v403 = vadd.f32 %v399, %v402
    %vm404 = vweird.f32 %v398
    %vm405 = vweird.f32 %v399
    %vm406 = vmor %vm404, %vm405
    %v407 = vsel %vm406, %v399, %v403
    %v408 = vand.u32 2147483647, %v398
    %vm409 = vcmp.eq.f32.partialorder %v408, 8.507059e+37
    %v410 = vand.u32 %v398, 2147483648
    %v411 = vor.u32 1.1754944e-38, %v410
    %v412 = vsel %vm409, %v411, %v407
    %v413 = vmul.f32 %v388, %v412
    %v414 = vmin.f32 %v413, 1.0
    %v415 = vmax.f32 %v414, -1.0
    %v416 = vmul.f32 %v255, %v255
    %v417 = vmin.f32 16.0, %v416
    %v418 = vmul.f32 %v417, 2.1237322e-06
    %v419 = vadd.f32 %v418, 0.00028619796
    %v420 = vmul.f32 %v417, %v419
    %v421 = vadd.f32 %v420, 0.0036580483
    %v422 = vmul.f32 %v417, %v421
    %v423 = vadd.f32 %v422, 0.05243302
    %v424 = vmul.f32 %v417, %v423
    %v425 = vadd.f32 %v424, 0.18741608
    %v426 = vmul.f32 %v417, %v425
    %v427 = vadd.f32 %v426, 1.1283791
    %v428 = vmul.f32 %v255, %v427
    %v429 = vmul.f32 %v417, 3.8918573e-05
    %v430 = vadd.f32 %v429, 0.001143296
    %v431 = vmul.f32 %v417, %v430
    %v432 = vadd.f32 %v431, 0.014752088
    %v433 = vmul.f32 %v417, %v432
    %v434 = vadd.f32 %v433, 0.112945676
    %v435 = vmul.f32 %v417, %v434
    %v436 = vadd.f32 %v435, 0.4994258
    %v437 = vmul.f32 %v417, %v436
    %v438 = vadd.f32 %v437, 1.0
    %v439 = vrcp.pop %v438
    %v440 = vmul.f32 %v438, %v439
    %v441 = vsub.f32 1.0, %v440
    %v442 = vmul.f32 %v439, %v441
    %v443 = vadd.f32 %v439, %v442
    %vm444 = vweird.f32 %v438
    %vm445 = vweird.f32 %v439
    %vm446 = vmor %vm444, %vm445
    %v447 = vsel %vm446, %v439, %v443
    %v448 = vand.u32 2147483647, %v438
    %vm449 = vcmp.eq.f32.partialorder %v448, 8.507059e+37
    %v450 = vand.u32 %v438, 2147483648
    %v451 = vor.u32 1.1754944e-38, %v450
    %v452 = vsel %vm449, %v451, %v447
    %v453 = vmul.f32 %v428, %v452
    %v454 = vmin.f32 %v453, 1.0
    %v455 = vmax.f32 %v454, -1.0
    %v456 = vadd.f32 %v295, 1.0
    %v457 = vadd.f32 %v335, 1.0
    %v458 = vadd.f32 %v375, 1.0
    %v459 = vadd.f32 %v415, 1.0
    %v460 = vadd.f32 %v455, 1.0
    %v461 = vmul.f32 %v246, %v456
    %v462 = vmul.f32 %v247, %v457
    %v463 = vmul.f32 %v248, %v458
    %v464 = vmul.f32 %v249, %v459
    %v465 = vmul.f32 %v250, %v460
    %v466 = vld [vmem:[#allocation8] sm:$0xff]
    %v467 = vld [vmem:[#allocation8 + $0x8] sm:$0xff]
    %v468 = vld [vmem:[#allocation8 + $0x10] sm:$0xff]
    %v469 = vld [vmem:[#allocation8 + $0x18] sm:$0xff]
    %v470 = vld [vmem:[#allocation8 + $0x20] sm:$0xff]
    %v471 = vld [vmem:[#allocation8 + $0x28] sm:$0xff]
    %v472 = vld [vmem:[#allocation8 + $0x30] sm:$0xff]
    %v473 = vld [vmem:[#allocation8 + $0x38] sm:$0xff]
    %v474 = vld [vmem:[#allocation8 + $0x40] sm:$0xff]
    %v475 = vld [vmem:[#allocation8 + $0x48] sm:$0xff]
    %v476 = vld [vmem:[#allocation8 + $0x50] sm:$0xff]
    %v477 = vld [vmem:[#allocation8 + $0x58] sm:$0xff]
    %v478 = vld [vmem:[#allocation8 + $0x60] sm:$0xff]
    %v479 = vld [vmem:[#allocation8 + $0x68] sm:$0xff]
    %v480 = vld [vmem:[#allocation8 + $0x70] sm:$0xff]
    %v481 = vld [vmem:[#allocation8 + $0x78] sm:$0xff]
    %v482 = vld [vmem:[#allocation8 + $0x80] sm:$0xff]
    %v483 = vld [vmem:[#allocation8 + $0x88] sm:$0xff]
    %v484 = vld [vmem:[#allocation8 + $0x90] sm:$0xff]
    %v485 = vld [vmem:[#allocation8 + $0x98] sm:$0xff]
    %v486 = vld [vmem:[#allocation8 + $0xa0] sm:$0xff]
    %v487 = vld [vmem:[#allocation8 + $0xa8] sm:$0xff]
    %v488 = vld [vmem:[#allocation8 + $0xb0] sm:$0xff]
    %v489 = vld [vmem:[#allocation8 + $0xb8] sm:$0xff]
    %v490 = vld [vmem:[#allocation8 + $0xc0] sm:$0xff]
    %v491 = vld [vmem:[#allocation8 + $0xc8] sm:$0xff]
    %v492 = vld [vmem:[#allocation8 + $0xd0] sm:$0xff]
    %v493 = vld [vmem:[#allocation8 + $0xd8] sm:$0xff]
    %v494 = vld [vmem:[#allocation8 + $0xe0] sm:$0xff]
    %v495 = vld [vmem:[#allocation8 + $0xe8] sm:$0xff]
    %v496 = vld [vmem:[#allocation8 + $0xf0] sm:$0xff]
    %v497 = vld [vmem:[#allocation8 + $0xf8] sm:$0xff]
    %v498 = vld [vmem:[#allocation8 + $0x100] sm:$0xff]
    %v499 = vld [vmem:[#allocation8 + $0x108] sm:$0xff]
    %v500 = vld [vmem:[#allocation8 + $0x110] sm:$0xff]
    %v501 = vld [vmem:[#allocation8 + $0x118] sm:$0xff]
    %v502 = vld [vmem:[#allocation8 + $0x120] sm:$0xff]
    %v503 = vld [vmem:[#allocation8 + $0x128] sm:$0xff]
    %v504 = vld [vmem:[#allocation8 + $0x130] sm:$0xff]
    %v505 = vld [vmem:[#allocation8 + $0x138] sm:$0xff]
    %v506 = vld [vmem:[#allocation8 + $0x140] sm:$0xff]
    %v507 = vld [vmem:[#allocation8 + $0x148] sm:$0xff]
    %v508 = vld [vmem:[#allocation8 + $0x150] sm:$0xff]
    %v509 = vld [vmem:[#allocation8 + $0x158] sm:$0xff]
    %v510 = vld [vmem:[#allocation8 + $0x160] sm:$0xff]
    %v511 = vld [vmem:[#allocation8 + $0x168] sm:$0xff]
    %v512 = vld [vmem:[#allocation8 + $0x170] sm:$0xff]
    %v513 = vld [vmem:[#allocation8 + $0x178] sm:$0xff]
    %v514 = vld [vmem:[#allocation8 + $0x180] sm:$0xff]
    %v515 = vld [vmem:[#allocation8 + $0x188] sm:$0xff]
    %v516 = vld [vmem:[#allocation8 + $0x190] sm:$0xff]
    %v517 = vld [vmem:[#allocation8 + $0x198] sm:$0xff]
    %v518 = vld [vmem:[#allocation8 + $0x1a0] sm:$0xff]
    %v519 = vld [vmem:[#allocation8 + $0x1a8] sm:$0xff]
    %v520 = vld [vmem:[#allocation8 + $0x1b0] sm:$0xff]
    %v521 = vld [vmem:[#allocation8 + $0x1b8] sm:$0xff]
    %v522 = vld [vmem:[#allocation8 + $0x1c0] sm:$0xff]
    %v523 = vld [vmem:[#allocation8 + $0x1c8] sm:$0xff]
    %v524 = vld [vmem:[#allocation8 + $0x1d0] sm:$0xff]
    %v525 = vld [vmem:[#allocation8 + $0x1d8] sm:$0xff]
    %v526 = vld [vmem:[#allocation8 + $0x1e0] sm:$0xff]
    %v527 = vld [vmem:[#allocation8 + $0x1e8] sm:$0xff]
    %v528 = vld [vmem:[#allocation8 + $0x1f0] sm:$0xff]
    %v529 = vld [vmem:[#allocation8 + $0x1f8] sm:$0xff]
    %v530 = vld [vmem:[#allocation8 + $0x200] sm:$0xff]
    %v531 = vld [vmem:[#allocation8 + $0x208] sm:$0xff]
    %v532 = vld [vmem:[#allocation8 + $0x210] sm:$0xff]
    %v533 = vld [vmem:[#allocation8 + $0x218] sm:$0xff]
    %v534 = vld [vmem:[#allocation8 + $0x220] sm:$0xff]
    %v535 = vld [vmem:[#allocation8 + $0x228] sm:$0xff]
    %v536 = vld [vmem:[#allocation8 + $0x230] sm:$0xff]
    %v537 = vld [vmem:[#allocation8 + $0x238] sm:$0xff]
    %v538 = vld [vmem:[#allocation8 + $0x240] sm:$0xff]
    %v539 = vld [vmem:[#allocation8 + $0x248] sm:$0xff]
    %v540 = vld [vmem:[#allocation8 + $0x250] sm:$0xff]
    %v541 = vld [vmem:[#allocation8 + $0x258] sm:$0xff]
    %v542 = vld [vmem:[#allocation8 + $0x260] sm:$0xff]
    %v543 = vld [vmem:[#allocation8 + $0x268] sm:$0xff]
    %v544 = vld [vmem:[#allocation8 + $0x270] sm:$0xff]
    %v545 = vld [vmem:[#allocation8 + $0x278] sm:$0xff]
    %v546 = vld [vmem:[%s4] sm:$0x1]
    %v548 = vperm.slane %v546, 0
    %550 = vmatpush.msra.mxu0 %v481
    %551 = vmatpush.msra.mxu0 %v480
    %552 = vmatpush.msra.mxu0 %v479
    %553 = vmatpush.msra.mxu0 %v478
    %554 = vmatpush.msra.mxu0 %v477
    %555 = vmatpush.msra.mxu0 %v476
    %556 = vmatpush.msra.mxu0 %v475
    %557 = vmatpush.msra.mxu0 %v474
    %558 = vmatpush.msra.mxu0 %v473
    %559 = vmatpush.msra.mxu0 %v472
    %560 = vmatpush.msra.mxu0 %v471
    %561 = vmatpush.msra.mxu0 %v470
    %562 = vmatpush.msra.mxu0 %v469
    %563 = vmatpush.msra.mxu0 %v468
    %564 = vmatpush.msra.mxu0 %v467
    %565 = vmatpush.msra.mxu0 %v466
    %566 = vmatmul.f32.gmra.mxu0 %v461
    %v567 = vpop.f32.mrf.mxu0
    %v568 = vadd.f32 %v548, %v567
    %569 = vdwg.mxu0
    %570 = vmatpush.msra.mxu0 %v497
    %571 = vmatpush.msra.mxu0 %v496
    %572 = vmatpush.msra.mxu0 %v495
    %573 = vmatpush.msra.mxu0 %v494
    %574 = vmatpush.msra.mxu0 %v493
    %575 = vmatpush.msra.mxu0 %v492
    %576 = vmatpush.msra.mxu0 %v491
    %577 = vmatpush.msra.mxu0 %v490
    %578 = vmatpush.msra.mxu0 %v489
    %579 = vmatpush.msra.mxu0 %v488
    %580 = vmatpush.msra.mxu0 %v487
    %581 = vmatpush.msra.mxu0 %v486
    %582 = vmatpush.msra.mxu0 %v485
    %583 = vmatpush.msra.mxu0 %v484
    %584 = vmatpush.msra.mxu0 %v483
    %585 = vmatpush.msra.mxu0 %v482
    %586 = vmatmul.f32.gmra.mxu0 %v462
    %v587 = vpop.f32.mrf.mxu0
    %v588 = vadd.f32 %v568, %v587
    %589 = vdwg.mxu0
    %590 = vmatpush.msra.mxu0 %v513
    %591 = vmatpush.msra.mxu0 %v512
    %592 = vmatpush.msra.mxu0 %v511
    %593 = vmatpush.msra.mxu0 %v510
    %594 = vmatpush.msra.mxu0 %v509
    %595 = vmatpush.msra.mxu0 %v508
    %596 = vmatpush.msra.mxu0 %v507
    %597 = vmatpush.msra.mxu0 %v506
    %598 = vmatpush.msra.mxu0 %v505
    %599 = vmatpush.msra.mxu0 %v504
    %600 = vmatpush.msra.mxu0 %v503
    %601 = vmatpush.msra.mxu0 %v502
    %602 = vmatpush.msra.mxu0 %v501
    %603 = vmatpush.msra.mxu0 %v500
    %604 = vmatpush.msra.mxu0 %v499
    %605 = vmatpush.msra.mxu0 %v498
    %606 = vmatmul.f32.gmra.mxu0 %v463
    %v607 = vpop.f32.mrf.mxu0
    %v608 = vadd.f32 %v588, %v607
    %609 = vdwg.mxu0
    %610 = vmatpush.msra.mxu0 %v529
    %611 = vmatpush.msra.mxu0 %v528
    %612 = vmatpush.msra.mxu0 %v527
    %613 = vmatpush.msra.mxu0 %v526
    %614 = vmatpush.msra.mxu0 %v525
    %615 = vmatpush.msra.mxu0 %v524
    %616 = vmatpush.msra.mxu0 %v523
    %617 = vmatpush.msra.mxu0 %v522
    %618 = vmatpush.msra.mxu0 %v521
    %619 = vmatpush.msra.mxu0 %v520
    %620 = vmatpush.msra.mxu0 %v519
    %621 = vmatpush.msra.mxu0 %v518
    %622 = vmatpush.msra.mxu0 %v517
    %623 = vmatpush.msra.mxu0 %v516
    %624 = vmatpush.msra.mxu0 %v515
    %625 = vmatpush.msra.mxu0 %v514
    %626 = vmatmul.f32.gmra.mxu0 %v464
    %v627 = vpop.f32.mrf.mxu0
    %v628 = vadd.f32 %v608, %v627
    %629 = vdwg.mxu0
    %630 = vmatpush.msra.mxu0 %v545
    %631 = vmatpush.msra.mxu0 %v544
    %632 = vmatpush.msra.mxu0 %v543
    %633 = vmatpush.msra.mxu0 %v542
    %634 = vmatpush.msra.mxu0 %v541
    %635 = vmatpush.msra.mxu0 %v540
    %636 = vmatpush.msra.mxu0 %v539
    %637 = vmatpush.msra.mxu0 %v538
    %638 = vmatpush.msra.mxu0 %v537
    %639 = vmatpush.msra.mxu0 %v536
    %640 = vmatpush.msra.mxu0 %v535
    %641 = vmatpush.msra.mxu0 %v534
    %642 = vmatpush.msra.mxu0 %v533
    %643 = vmatpush.msra.mxu0 %v532
    %644 = vmatpush.msra.mxu0 %v531
    %645 = vmatpush.msra.mxu0 %v530
    %646 = vmatmul.f32.gmra.mxu0 %v465
    %v647 = vpop.f32.mrf.mxu0
    %v648 = vadd.f32 %v628, %v647
    %649 = vdwg.mxu0
    %650 = vst [vmem:[#allocation10] sm:$0xff] %v648
    // Predicated region
    $region38: #{tpu_custom_call.1} parent=1 // pred_check
      _
    $region39: #{tpu_custom_call.1} parent=1 // pred_check_branch
      %652 = sbr.rel (0) target = $region41
    $region40: #{tpu_custom_call.1} parent=1 // pred_region
      %654 = vsyncadd [#allocation4], 0
      %s656 = sshll.u32 [#allocation10], 4
      %s657 = int_to_ptr.vmem [resolvable:$true] %s656
      %s658 = sshll.u32 %s5, 4
      %s659 = int_to_ptr.hbm [resolvable:$true] %s658
      %661 = dma.vmem_to_hbm [thread:$0]  %s657, 128, %s659, [#allocation4]
    $region41: #{tpu_custom_call.1} parent=1 // pred_fallthru
      _
    // Predicated region
    $region42: #{tpu_custom_call.1} parent=1 // pred_check
      _
    $region43: #{tpu_custom_call.1} parent=1 // pred_check_branch
      %663 = sbr.rel (0) target = $region45
    $region44: #{tpu_custom_call.1} parent=1 // pred_region
      %665 = dma.done [#allocation4], 128
    $region45: #{tpu_custom_call.1} parent=1 // pred_fallthru
      _
    %666 = vsyncpa [#allocation3], 1
    %667 = vsyncpa [#allocation6], 1
    %668 = vsyncpa [#allocation9], 1
    %669 = vsyncpa [#allocation4], 1

</llo_original>
